<compile_context>
chip_gen: v6e
topology: v6e:2x2x1
jax: 0.10.0
libtpu: 0.0.40
codegen_flags: <defaults>
</compile_context>

<pallas_src>
import functools

import jax
import jax.numpy as jnp
from jax import lax
from jax.experimental import pallas as pl
from jax.experimental.pallas import tpu as pltpu

INPUT_SIZE = 2      # 2-D sample points (mode-collapse GAN discriminator input)
HIDDEN = 128        # hidden_size
OUTPUT_SIZE = 1     # output_size (real/fake score)
LANE = 128
SUBLANE = 8
TILE_B_MAX = 2048   # batch rows per grid step (sweep 1024/2048/4096 when tuning)

# Parameter-pack row layout (one (16, 128) f32 tile):
#   rows 0..7               : w3^T zero-padded to 8 rows (row 0 = w3[:, 0])
#   row  8                  : b1
#   row  9                  : b2
#   row 10, lane 0          : b3
#   rows 11..11+input_size  : w1 rows (w1[k, :])
PACK_ROWS = 16
ROW_W3 = 0
ROW_B1 = 8
ROW_B2 = 9
ROW_B3 = 10
ROW_W1 = 11

assert HIDDEN == LANE, "parameter-pack layout assumes hidden_size == 128"
assert OUTPUT_SIZE == 1, "lane-dense score packing assumes output_size == 1"
assert ROW_W1 + INPUT_SIZE <= PACK_ROWS


def _round_up(x, m):
    return (x + m - 1) // m * m


def d_kernel(x_ref, w2_ref, p_ref, o_ref):
    b1 = p_ref[ROW_B1:ROW_B1 + 1, :]          # (1, 128)
    b2 = p_ref[ROW_B2:ROW_B2 + 1, :]          # (1, 128)
    b3 = p_ref[ROW_B3:ROW_B3 + 1, 0:1]        # (1, 1) -> lane-broadcast below

    # ---- Layer 1 on the VPU: h = ReLU(x @ w1 + b1).  K = input_size is tiny,
    # so broadcast multiply-adds beat an MXU dot and need no contraction pad.
    acc = x_ref[:, 0:1] * p_ref[ROW_W1:ROW_W1 + 1, :]
    for k in range(1, INPUT_SIZE):
        acc = acc + x_ref[:, k:k + 1] * p_ref[ROW_W1 + k:ROW_W1 + k + 1, :]
    h = jnp.maximum(acc + b1, 0.0)            # (tile_b, 128)

    # ---- Layer 2 on the MXU: h = ReLU(h @ w2 + b2). ----
    h = jnp.dot(h, w2_ref[...], preferred_element_type=jnp.float32) + b2
    h = jnp.maximum(h, 0.0)                   # (tile_b, 128)

    # ---- Layer 3: score = h @ w3 + b3, computed transposed (w3_pad @ h^T)
    # so the result lands as a lane-dense (1, tile_b) row. ----
    w3_blk = p_ref[ROW_W3:ROW_W3 + SUBLANE, :]     # (8, 128): row 0 = w3, rest 0
    o8 = lax.dot_general(w3_blk, h, (((1,), (1,)), ((), ())),
                         preferred_element_type=jnp.float32)   # (8, tile_b)
    o_ref[...] = (o8[0:1, :] + b3).astype(o_ref.dtype)


@functools.partial(jax.jit, static_argnames=("tile_b",))
def d_forward(x, packed_params, tile_b=None):
    """x: (B, input_size) f32 -> (B, 1) f32 discriminator scores."""
    w2, pack = packed_params
    B = x.shape[0]
    if tile_b is None:
        tile_b = min(TILE_B_MAX, _round_up(B, LANE))
    num_tiles = pl.cdiv(B, tile_b)

    out_rows = pl.pallas_call(
        d_kernel,
        out_shape=jax.ShapeDtypeStruct((num_tiles, tile_b), jnp.float32),
        grid=(num_tiles,),
        in_specs=[
            pl.BlockSpec((tile_b, INPUT_SIZE), lambda i: (i, 0)),   # x tile
            pl.BlockSpec((HIDDEN, HIDDEN), lambda i: (0, 0)),       # w2 (resident)
            pl.BlockSpec((PACK_ROWS, LANE), lambda i: (0, 0)),      # param pack
        ],
        out_specs=pl.BlockSpec((1, tile_b), lambda i: (i, 0)),      # packed scores
        compiler_params=pltpu.CompilerParams(
            dimension_semantics=("parallel",),
            vmem_limit_bytes=32 * 1024 * 1024,
        ),
    )(x, w2, pack)

    # Row i of out_rows holds the scores for batch rows [i*tile_b, (i+1)*tile_b).
    return out_rows.reshape(-1)[:B].reshape(B, OUTPUT_SIZE)


def init_params(key):
    """Deterministic init mimicking PyTorch nn.Linear defaults
    (uniform +/- 1/sqrt(fan_in)).  Weights stored as [in_features, out_features]
    (transposed vs PyTorch) so the math is x @ W."""
    ks = jax.random.split(key, 6)

    def lin(kw, kb, fan_in, fan_out):
        bound = 1.0 / (fan_in ** 0.5)
        w = jax.random.uniform(kw, (fan_in, fan_out), jnp.float32, -bound, bound)
        b = jax.random.uniform(kb, (fan_out,), jnp.float32, -bound, bound)
        return w, b

    w1, b1 = lin(ks[0], ks[1], INPUT_SIZE, HIDDEN)
    w2, b2 = lin(ks[2], ks[3], HIDDEN, HIDDEN)
    w3, b3 = lin(ks[4], ks[5], HIDDEN, OUTPUT_SIZE)
    return (w1, b1, w2, b2, w3, b3)


def pack_params(raw):
    """Pack w1/b1/b2/w3/b3 into one (16, 128) f32 tile; keep w2 separate."""
    w1, b1, w2, b2, w3, b3 = raw
    pack = jnp.zeros((PACK_ROWS, LANE), jnp.float32)
    pack = pack.at[ROW_W3, :].set(w3[:, 0])
    pack = pack.at[ROW_B1, :].set(b1)
    pack = pack.at[ROW_B2, :].set(b2)
    pack = pack.at[ROW_B3, 0].set(b3[0])
    pack = pack.at[ROW_W1:ROW_W1 + INPUT_SIZE, :].set(w1)
    return (w2, pack)


def d_reference(x, raw):
    """Pure-JAX reference (unpacked params)."""
    w1, b1, w2, b2, w3, b3 = raw
    h = jnp.maximum(x @ w1 + b1, 0.0)
    h = jnp.maximum(h @ w2 + b2, 0.0)
    return h @ w3 + b3


if __name__ == "__main__":
    key = jax.random.PRNGKey(0)
    k_x1, k_x2, k_p = jax.random.split(key, 3)

    raw_params = init_params(k_p)
    packed = pack_params(raw_params)

    # Check 1: tiny batch (single, partial tile).
    B1 = 8
    x1 = jax.random.normal(k_x1, (B1, INPUT_SIZE), dtype=jnp.float32)
    out1 = jax.block_until_ready(d_forward(x1, packed))
    ref1 = d_reference(x1, raw_params)
    assert out1.shape == (B1, OUTPUT_SIZE)
    assert jnp.allclose(out1, ref1, atol=1e-4, rtol=1e-4)

    # Check 2: multi-tile grid with a ragged last tile.
    B2 = 300
    x2 = jax.random.normal(k_x2, (B2, INPUT_SIZE), dtype=jnp.float32)
    out2 = jax.block_until_ready(d_forward(x2, packed, tile_b=128))
    ref2 = d_reference(x2, raw_params)
    assert out2.shape == (B2, OUTPUT_SIZE)
    assert jnp.allclose(out2, ref2, atol=1e-4, rtol=1e-4)

    print("KERNEL_OK")
</pallas_src>

<mosaic_0001>
module attributes {stable_mosaic.version = 11 : i64} {
  func.func @d_kernel(%arg0: i32, %arg1: memref<128x2xf32, #tpu.memory_space<vmem>>, %arg2: memref<128x128xf32, #tpu.memory_space<vmem>>, %arg3: memref<16x128xf32, #tpu.memory_space<vmem>>, %arg4: memref<1x128xf32, #tpu.memory_space<vmem>>) attributes {dimension_semantics = [#tpu.dimension_semantics<parallel>], iteration_bounds = array<i64: 1>, scalar_prefetch = 0 : i64, scratch_operands = 0 : i64, tpu.core_type = #tpu.core_type<tc>, window_params = [{transform_indices = @transform_0, window_bounds = array<i64: 128, 2>}, {pipeline_mode = #tpu.pipeline_mode<synchronous>, transform_indices = @transform_1, window_bounds = array<i64: 128, 128>}, {pipeline_mode = #tpu.pipeline_mode<synchronous>, transform_indices = @transform_2, window_bounds = array<i64: 16, 128>}, {transform_indices = @transform_3, window_bounds = array<i64: 1, 128>}]} {
    %c8 = arith.constant 8 : index
    %c0 = arith.constant 0 : index
    %0 = vector.load %arg3[%c8, %c0] : memref<16x128xf32, #tpu.memory_space<vmem>>, vector<1x128xf32>
    %c9 = arith.constant 9 : index
    %c0_0 = arith.constant 0 : index
    %1 = vector.load %arg3[%c9, %c0_0] : memref<16x128xf32, #tpu.memory_space<vmem>>, vector<1x128xf32>
    %c10 = arith.constant 10 : index
    %c0_1 = arith.constant 0 : index
    %2 = vector.load %arg3[%c10, %c0_1] : memref<16x128xf32, #tpu.memory_space<vmem>>, vector<1x1xf32>
    %c0_2 = arith.constant 0 : index
    %c0_3 = arith.constant 0 : index
    %3 = vector.load %arg1[%c0_2, %c0_3] : memref<128x2xf32, #tpu.memory_space<vmem>>, vector<128x1xf32>
    %c11 = arith.constant 11 : index
    %c0_4 = arith.constant 0 : index
    %4 = vector.load %arg3[%c11, %c0_4] : memref<16x128xf32, #tpu.memory_space<vmem>>, vector<1x128xf32>
    %5 = vector.broadcast %3 : vector<128x1xf32> to vector<128x128xf32>
    %6 = vector.broadcast %4 : vector<1x128xf32> to vector<128x128xf32>
    %7 = arith.mulf %5, %6 : vector<128x128xf32>
    %c0_5 = arith.constant 0 : index
    %c1 = arith.constant 1 : index
    %8 = vector.load %arg1[%c0_5, %c1] : memref<128x2xf32, #tpu.memory_space<vmem>>, vector<128x1xf32>
    %c12 = arith.constant 12 : index
    %c0_6 = arith.constant 0 : index
    %9 = vector.load %arg3[%c12, %c0_6] : memref<16x128xf32, #tpu.memory_space<vmem>>, vector<1x128xf32>
    %10 = vector.broadcast %8 : vector<128x1xf32> to vector<128x128xf32>
    %11 = vector.broadcast %9 : vector<1x128xf32> to vector<128x128xf32>
    %12 = arith.mulf %10, %11 : vector<128x128xf32>
    %13 = arith.addf %7, %12 : vector<128x128xf32>
    %14 = vector.broadcast %0 : vector<1x128xf32> to vector<128x128xf32>
    %15 = arith.addf %13, %14 : vector<128x128xf32>
    %cst = arith.constant 0.000000e+00 : f32
    %16 = vector.broadcast %cst : f32 to vector<128x128xf32>
    %17 = arith.maximumf %15, %16 : vector<128x128xf32>
    %c0_7 = arith.constant 0 : index
    %c0_8 = arith.constant 0 : index
    %18 = vector.load %arg2[%c0_7, %c0_8] : memref<128x128xf32, #tpu.memory_space<vmem>>, vector<128x128xf32>
    %cst_9 = arith.constant dense<0.000000e+00> : vector<128x128xf32>
    %19 = tpu.matmul %17, %18, %cst_9 {dimension_numbers = #tpu.dot_dimension_numbers<[1], [0], [0], [1], [0, 0, 1, 1], [], []>} : vector<128x128xf32>, vector<128x128xf32>, vector<128x128xf32> -> vector<128x128xf32>
    %20 = vector.broadcast %1 : vector<1x128xf32> to vector<128x128xf32>
    %21 = arith.addf %19, %20 : vector<128x128xf32>
    %cst_10 = arith.constant 0.000000e+00 : f32
    %22 = vector.broadcast %cst_10 : f32 to vector<128x128xf32>
    %23 = arith.maximumf %21, %22 : vector<128x128xf32>
    %c0_11 = arith.constant 0 : index
    %c0_12 = arith.constant 0 : index
    %24 = vector.load %arg3[%c0_11, %c0_12] : memref<16x128xf32, #tpu.memory_space<vmem>>, vector<8x128xf32>
    %cst_13 = arith.constant dense<0.000000e+00> : vector<8x128xf32>
    %25 = tpu.matmul %24, %23, %cst_13 {dimension_numbers = #tpu.dot_dimension_numbers<[1], [1], [0], [0], [0, 0, 1, 0], [], []>} : vector<8x128xf32>, vector<128x128xf32>, vector<8x128xf32> -> vector<8x128xf32>
    %26 = vector.extract_strided_slice %25 {offsets = [0, 0], sizes = [1, 128], strides = [1, 1]} : vector<8x128xf32> to vector<1x128xf32>
    %27 = vector.broadcast %2 : vector<1x1xf32> to vector<1x128xf32>
    %28 = arith.addf %26, %27 : vector<1x128xf32>
    %c0_14 = arith.constant 0 : index
    %c0_15 = arith.constant 0 : index
    %29 = vector.load %arg4[%c0_14, %c0_15] : memref<1x128xf32, #tpu.memory_space<vmem>>, vector<1x128xf32>
    tpu.vector_store %arg4[%c0_14, %c0_15], %28 {strides = array<i32>} : memref<1x128xf32, #tpu.memory_space<vmem>>, vector<1x128xf32>,
    return
  }
  func.func @transform_0(%arg0: i32) -> (i32, i32) {
    %c0_i32 = arith.constant 0 : i32
    %c0_i32_0 = arith.constant 0 : i32
    return %arg0, %c0_i32 : i32, i32
  }
  func.func @transform_1(%arg0: i32) -> (i32, i32) {
    %c0_i32 = arith.constant 0 : i32
    %c0_i32_0 = arith.constant 0 : i32
    %c0_i32_1 = arith.constant 0 : i32
    return %c0_i32, %c0_i32_0 : i32, i32
  }
  func.func @transform_2(%arg0: i32) -> (i32, i32) {
    %c0_i32 = arith.constant 0 : i32
    %c0_i32_0 = arith.constant 0 : i32
    %c0_i32_1 = arith.constant 0 : i32
    return %c0_i32, %c0_i32_0 : i32, i32
  }
  func.func @transform_3(%arg0: i32) -> (i32, i32) {
    %c0_i32 = arith.constant 0 : i32
    %c0_i32_0 = arith.constant 0 : i32
    return %arg0, %c0_i32 : i32, i32
  }
}

</mosaic_0001>

<llo_original>
// kernel: d_forward.1
$region0: #{d_forward.1}
  #allocation0 [shape = 'u32[]', space=smem, size = 0x4, offset = 0x4, fixed_abs, tag = 'smem constant byte address 0x4 - core index']
  #allocation1 [shape = 'u32[144,128]{1,0:T(1,128)}', space=vmem, size = 0x12000, scoped, tag = 'internal scratch']
  %s0 = inlined_call_operand.vmem [shape: f32[8,2], index: 0, kind: input, shape index: {}]
  %s1 = inlined_call_operand.hbm [shape: f32[128,128], index: 1, kind: input, shape index: {}]
  %s2 = inlined_call_operand.hbm [shape: f32[16,128], index: 2, kind: input, shape index: {}]
  %s3 = inlined_call_operand.vmem [shape: f32[1,128], index: 3, kind: output, shape index: {}]
  %s4 = sld [smem:[#allocation0]]
  $region30: #{d_forward.1} parent=0
    _
  %s6 = ssub.s32 1, %s4
  %s7 = scalar_select 0, %s6, %s4
  $region1: #{d_forward.1} parent=0
    #allocation2 [shape = 'u8[65536]{0}', space=vmem, size = 0x10000, scoped, tag = 'input window, operand 1, single buffered']
    #allocation3 [shape = 's32[1]{0}', space=sflag, size = 0x4, scoped, tag = 'scoped memory for d_forward.1']
    #allocation4 [shape = 'u8[8192]{0}', space=vmem, size = 0x2000, scoped, tag = 'input window, operand 2, single buffered']
    #allocation5 [shape = 's32[1]{0}', space=sflag, size = 0x4, scoped, tag = 'scoped memory for d_forward.1']
    %8 = vsyncpa [#allocation3], 0
    %9 = vsyncpa [#allocation5], 0
    // Predicated region
    $region2: #{d_forward.1} parent=1 // pred_check
      _
    $region3: #{d_forward.1} parent=1 // pred_check_branch
      %11 = sbr.rel (0) target = $region5
    $region4: #{d_forward.1} parent=1 // pred_region
      _
    $region5: #{d_forward.1} parent=1 // pred_fallthru
      _
    // Predicated region
    $region6: #{d_forward.1} parent=1 // pred_check
      _
    $region7: #{d_forward.1} parent=1 // pred_check_branch
      %13 = sbr.rel (0) target = $region9
    $region8: #{d_forward.1} parent=1 // pred_region
      %s15 = ssub.s32 2048, 2048
      %16 = vsyncadd [#allocation3], %s15
      %s17 = sshll.u32 [#allocation2], 4
      %s18 = int_to_ptr.vmem [resolvable:$true] %s17
      %23 = dma.hbm_to_vmem [thread:$0]  %s1, 2048, %s18, [#allocation3], 128, 128, 8
    $region9: #{d_forward.1} parent=1 // pred_fallthru
      _
    // Predicated region
    $region10: #{d_forward.1} parent=1 // pred_check
      _
    $region11: #{d_forward.1} parent=1 // pred_check_branch
      %25 = sbr.rel (0) target = $region13
    $region12: #{d_forward.1} parent=1 // pred_region
      %s27 = ssub.s32 256, 256
      %28 = vsyncadd [#allocation5], %s27
      %s29 = sshll.u32 [#allocation4], 4
      %s30 = int_to_ptr.vmem [resolvable:$true] %s29
      %35 = dma.hbm_to_vmem [thread:$0]  %s2, 256, %s30, [#allocation5], 128, 128, 8
    $region13: #{d_forward.1} parent=1 // pred_fallthru
      _
    // Predicated region
    $region14: #{d_forward.1} parent=1 // pred_check
      _
    $region15: #{d_forward.1} parent=1 // pred_check_branch
      %37 = sbr.rel (0) target = $region17
    $region16: #{d_forward.1} parent=1 // pred_region
      %38 = dma.done [#allocation3], 2048
    $region17: #{d_forward.1} parent=1 // pred_fallthru
      _
    // Predicated region
    $region18: #{d_forward.1} parent=1 // pred_check
      _
    $region19: #{d_forward.1} parent=1 // pred_check_branch
      %40 = sbr.rel (0) target = $region21
    $region20: #{d_forward.1} parent=1 // pred_region
      %41 = dma.done [#allocation5], 256
    $region21: #{d_forward.1} parent=1 // pred_fallthru
      _
    %v42 = vld [vmem:[#allocation4 + $0x8] sm:$0x1]
    %v43 = vld [vmem:[#allocation4 + $0x9] sm:$0x1]
    %v44 = vld [vmem:[#allocation4 + $0xa] sm:$0x1]
    %v45 = vld [vmem:[%s0] sm:$0xff]
    %v46 = vld [vmem:[%s0 + $0x8] sm:$0xff]
    %v47 = vld [vmem:[%s0 + $0x10] sm:$0xff]
    %v48 = vld [vmem:[%s0 + $0x18] sm:$0xff]
    %v49 = vld [vmem:[%s0 + $0x20] sm:$0xff]
    %v50 = vld [vmem:[%s0 + $0x28] sm:$0xff]
    %v51 = vld [vmem:[%s0 + $0x30] sm:$0xff]
    %v52 = vld [vmem:[%s0 + $0x38] sm:$0xff]
    %v53 = vld [vmem:[%s0 + $0x40] sm:$0xff]
    %v54 = vld [vmem:[%s0 + $0x48] sm:$0xff]
    %v55 = vld [vmem:[%s0 + $0x50] sm:$0xff]
    %v56 = vld [vmem:[%s0 + $0x58] sm:$0xff]
    %v57 = vld [vmem:[%s0 + $0x60] sm:$0xff]
    %v58 = vld [vmem:[%s0 + $0x68] sm:$0xff]
    %v59 = vld [vmem:[%s0 + $0x70] sm:$0xff]
    %v60 = vld [vmem:[%s0 + $0x78] sm:$0xff]
    %v61 = vld [vmem:[#allocation4 + $0xb] sm:$0x1]
    %63 = vset.pattern.permute.xlu0 0
    %64 = vperm.xlu0 %63, %v45
    %v65 = vpop.permute.xlu0 %64
    %68 = vset.pattern.permute.xlu0 0
    %69 = vperm.xlu0 %68, %v46
    %v70 = vpop.permute.xlu0 %69
    %73 = vset.pattern.permute.xlu0 0
    %74 = vperm.xlu0 %73, %v47
    %v75 = vpop.permute.xlu0 %74
    %78 = vset.pattern.permute.xlu0 0
    %79 = vperm.xlu0 %78, %v48
    %v80 = vpop.permute.xlu0 %79
    %83 = vset.pattern.permute.xlu0 0
    %84 = vperm.xlu0 %83, %v49
    %v85 = vpop.permute.xlu0 %84
    %88 = vset.pattern.permute.xlu0 0
    %89 = vperm.xlu0 %88, %v50
    %v90 = vpop.permute.xlu0 %89
    %93 = vset.pattern.permute.xlu0 0
    %94 = vperm.xlu0 %93, %v51
    %v95 = vpop.permute.xlu0 %94
    %98 = vset.pattern.permute.xlu0 0
    %99 = vperm.xlu0 %98, %v52
    %v100 = vpop.permute.xlu0 %99
    %103 = vset.pattern.permute.xlu0 0
    %104 = vperm.xlu0 %103, %v53
    %v105 = vpop.permute.xlu0 %104
    %108 = vset.pattern.permute.xlu0 0
    %109 = vperm.xlu0 %108, %v54
    %v110 = vpop.permute.xlu0 %109
    %113 = vset.pattern.permute.xlu0 0
    %114 = vperm.xlu0 %113, %v55
    %v115 = vpop.permute.xlu0 %114
    %118 = vset.pattern.permute.xlu0 0
    %119 = vperm.xlu0 %118, %v56
    %v120 = vpop.permute.xlu0 %119
    %123 = vset.pattern.permute.xlu0 0
    %124 = vperm.xlu0 %123, %v57
    %v125 = vpop.permute.xlu0 %124
    %128 = vset.pattern.permute.xlu0 0
    %129 = vperm.xlu0 %128, %v58
    %v130 = vpop.permute.xlu0 %129
    %133 = vset.pattern.permute.xlu0 0
    %134 = vperm.xlu0 %133, %v59
    %v135 = vpop.permute.xlu0 %134
    %138 = vset.pattern.permute.xlu0 0
    %139 = vperm.xlu0 %138, %v60
    %v140 = vpop.permute.xlu0 %139
    %v142 = vlaneseq
    %v143 = vshrl.u32 %v142, 7
    %v144 = vsub.s32 0, %v143
    %v145 = vrot.slane %v61, %v144
    %v146 = vmul.f32 %v65, %v145
    %v147 = vmul.f32 %v70, %v145
    %v148 = vmul.f32 %v75, %v145
    %v149 = vmul.f32 %v80, %v145
    %v150 = vmul.f32 %v85, %v145
    %v151 = vmul.f32 %v90, %v145
    %v152 = vmul.f32 %v95, %v145
    %v153 = vmul.f32 %v100, %v145
    %v154 = vmul.f32 %v105, %v145
    %v155 = vmul.f32 %v110, %v145
    %v156 = vmul.f32 %v115, %v145
    %v157 = vmul.f32 %v120, %v145
    %v158 = vmul.f32 %v125, %v145
    %v159 = vmul.f32 %v130, %v145
    %v160 = vmul.f32 %v135, %v145
    %v161 = vmul.f32 %v140, %v145
    %v162 = vld [vmem:[#allocation4 + $0xc] sm:$0x1]
    %163 = vset.pattern.permute.xlu0 1
    %164 = vperm.xlu0 %163, %v45
    %v165 = vpop.permute.xlu0 %164
    %167 = vset.pattern.permute.xlu0 1
    %168 = vperm.xlu0 %167, %v46
    %v169 = vpop.permute.xlu0 %168
    %171 = vset.pattern.permute.xlu0 1
    %172 = vperm.xlu0 %171, %v47
    %v173 = vpop.permute.xlu0 %172
    %175 = vset.pattern.permute.xlu0 1
    %176 = vperm.xlu0 %175, %v48
    %v177 = vpop.permute.xlu0 %176
    %179 = vset.pattern.permute.xlu0 1
    %180 = vperm.xlu0 %179, %v49
    %v181 = vpop.permute.xlu0 %180
    %183 = vset.pattern.permute.xlu0 1
    %184 = vperm.xlu0 %183, %v50
    %v185 = vpop.permute.xlu0 %184
    %187 = vset.pattern.permute.xlu0 1
    %188 = vperm.xlu0 %187, %v51
    %v189 = vpop.permute.xlu0 %188
    %191 = vset.pattern.permute.xlu0 1
    %192 = vperm.xlu0 %191, %v52
    %v193 = vpop.permute.xlu0 %192
    %195 = vset.pattern.permute.xlu0 1
    %196 = vperm.xlu0 %195, %v53
    %v197 = vpop.permute.xlu0 %196
    %199 = vset.pattern.permute.xlu0 1
    %200 = vperm.xlu0 %199, %v54
    %v201 = vpop.permute.xlu0 %200
    %203 = vset.pattern.permute.xlu0 1
    %204 = vperm.xlu0 %203, %v55
    %v205 = vpop.permute.xlu0 %204
    %207 = vset.pattern.permute.xlu0 1
    %208 = vperm.xlu0 %207, %v56
    %v209 = vpop.permute.xlu0 %208
    %211 = vset.pattern.permute.xlu0 1
    %212 = vperm.xlu0 %211, %v57
    %v213 = vpop.permute.xlu0 %212
    %215 = vset.pattern.permute.xlu0 1
    %216 = vperm.xlu0 %215, %v58
    %v217 = vpop.permute.xlu0 %216
    %219 = vset.pattern.permute.xlu0 1
    %220 = vperm.xlu0 %219, %v59
    %v221 = vpop.permute.xlu0 %220
    %223 = vset.pattern.permute.xlu0 1
    %224 = vperm.xlu0 %223, %v60
    %v225 = vpop.permute.xlu0 %224
    %v227 = vlaneseq
    %v228 = vshrl.u32 %v227, 7
    %v229 = vsub.s32 0, %v228
    %v230 = vrot.slane %v162, %v229
    %v231 = vmul.f32 %v165, %v230
    %v232 = vmul.f32 %v169, %v230
    %v233 = vmul.f32 %v173, %v230
    %v234 = vmul.f32 %v177, %v230
    %v235 = vmul.f32 %v181, %v230
    %v236 = vmul.f32 %v185, %v230
    %v237 = vmul.f32 %v189, %v230
    %v238 = vmul.f32 %v193, %v230
    %v239 = vmul.f32 %v197, %v230
    %v240 = vmul.f32 %v201, %v230
    %v241 = vmul.f32 %v205, %v230
    %v242 = vmul.f32 %v209, %v230
    %v243 = vmul.f32 %v213, %v230
    %v244 = vmul.f32 %v217, %v230
    %v245 = vmul.f32 %v221, %v230
    %v246 = vmul.f32 %v225, %v230
    %v247 = vadd.f32 %v146, %v231
    %v248 = vadd.f32 %v147, %v232
    %v249 = vadd.f32 %v148, %v233
    %v250 = vadd.f32 %v149, %v234
    %v251 = vadd.f32 %v150, %v235
    %v252 = vadd.f32 %v151, %v236
    %v253 = vadd.f32 %v152, %v237
    %v254 = vadd.f32 %v153, %v238
    %v255 = vadd.f32 %v154, %v239
    %v256 = vadd.f32 %v155, %v240
    %v257 = vadd.f32 %v156, %v241
    %v258 = vadd.f32 %v157, %v242
    %v259 = vadd.f32 %v158, %v243
    %v260 = vadd.f32 %v159, %v244
    %v261 = vadd.f32 %v160, %v245
    %v262 = vadd.f32 %v161, %v246
    %v263 = vlaneseq
    %v264 = vshrl.u32 %v263, 7
    %v265 = vsub.s32 0, %v264
    %v266 = vrot.slane %v42, %v265
    %v267 = vadd.f32 %v247, %v266
    %v268 = vadd.f32 %v248, %v266
    %v269 = vadd.f32 %v249, %v266
    %v270 = vadd.f32 %v250, %v266
    %v271 = vadd.f32 %v251, %v266
    %v272 = vadd.f32 %v252, %v266
    %v273 = vadd.f32 %v253, %v266
    %v274 = vadd.f32 %v254, %v266
    %v275 = vadd.f32 %v255, %v266
    %v276 = vadd.f32 %v256, %v266
    %v277 = vadd.f32 %v257, %v266
    %v278 = vadd.f32 %v258, %v266
    %v279 = vadd.f32 %v259, %v266
    %v280 = vadd.f32 %v260, %v266
    %v281 = vadd.f32 %v261, %v266
    %v282 = vadd.f32 %v262, %v266
    %v283 = vmax.f32 %v267, 0.0
    %v284 = vmax.f32 %v268, 0.0
    %v285 = vmax.f32 %v269, 0.0
    %v286 = vmax.f32 %v270, 0.0
    %v287 = vmax.f32 %v271, 0.0
    %v288 = vmax.f32 %v272, 0.0
    %v289 = vmax.f32 %v273, 0.0
    %v290 = vmax.f32 %v274, 0.0
    %v291 = vmax.f32 %v275, 0.0
    %v292 = vmax.f32 %v276, 0.0
    %v293 = vmax.f32 %v277, 0.0
    %v294 = vmax.f32 %v278, 0.0
    %v295 = vmax.f32 %v279, 0.0
    %v296 = vmax.f32 %v280, 0.0
    %v297 = vmax.f32 %v281, 0.0
    %v298 = vmax.f32 %v282, 0.0
    %v299 = vld [vmem:[#allocation2] sm:$0xff]
    %v300 = vld [vmem:[#allocation2 + $0x8] sm:$0xff]
    %v301 = vld [vmem:[#allocation2 + $0x10] sm:$0xff]
    %v302 = vld [vmem:[#allocation2 + $0x18] sm:$0xff]
    %v303 = vld [vmem:[#allocation2 + $0x20] sm:$0xff]
    %v304 = vld [vmem:[#allocation2 + $0x28] sm:$0xff]
    %v305 = vld [vmem:[#allocation2 + $0x30] sm:$0xff]
    %v306 = vld [vmem:[#allocation2 + $0x38] sm:$0xff]
    %v307 = vld [vmem:[#allocation2 + $0x40] sm:$0xff]
    %v308 = vld [vmem:[#allocation2 + $0x48] sm:$0xff]
    %v309 = vld [vmem:[#allocation2 + $0x50] sm:$0xff]
    %v310 = vld [vmem:[#allocation2 + $0x58] sm:$0xff]
    %v311 = vld [vmem:[#allocation2 + $0x60] sm:$0xff]
    %v312 = vld [vmem:[#allocation2 + $0x68] sm:$0xff]
    %v313 = vld [vmem:[#allocation2 + $0x70] sm:$0xff]
    %v314 = vld [vmem:[#allocation2 + $0x78] sm:$0xff]
    %v315 = vlaneseq
    %v316 = vshrl.u32 %v315, 7
    %v317 = vsub.s32 0, %v316
    %v318 = vrot.slane %v43, %v317
    %319 = vmatprep.subr.mxu0 0.0
    %320 = vmatpush1.msra.mxu0 %v314
    %321 = vmatprep.subr.mxu0 0.0
    %322 = vmatpush1.msra.mxu0 %v313
    %323 = vmatprep.subr.mxu0 0.0
    %324 = vmatpush1.msra.mxu0 %v312
    %325 = vmatprep.subr.mxu0 0.0
    %326 = vmatpush1.msra.mxu0 %v311
    %327 = vmatprep.subr.mxu0 0.0
    %328 = vmatpush1.msra.mxu0 %v310
    %329 = vmatprep.subr.mxu0 0.0
    %330 = vmatpush1.msra.mxu0 %v309
    %331 = vmatprep.subr.mxu0 0.0
    %332 = vmatpush1.msra.mxu0 %v308
    %333 = vmatprep.subr.mxu0 0.0
    %334 = vmatpush1.msra.mxu0 %v307
    %335 = vmatprep.subr.mxu0 0.0
    %336 = vmatpush1.msra.mxu0 %v306
    %337 = vmatprep.subr.mxu0 0.0
    %338 = vmatpush1.msra.mxu0 %v305
    %339 = vmatprep.subr.mxu0 0.0
    %340 = vmatpush1.msra.mxu0 %v304
    %341 = vmatprep.subr.mxu0 0.0
    %342 = vmatpush1.msra.mxu0 %v303
    %343 = vmatprep.subr.mxu0 0.0
    %344 = vmatpush1.msra.mxu0 %v302
    %345 = vmatprep.subr.mxu0 0.0
    %346 = vmatpush1.msra.mxu0 %v301
    %347 = vmatprep.subr.mxu0 0.0
    %348 = vmatpush1.msra.mxu0 %v300
    %349 = vmatprep.subr.mxu0 0.0
    %350 = vmatpush1.msra.mxu0 %v299
    %351 = vmatprep.subr.mxu0 0.0
    %352 = vmatpush2.msra.mxu0 0.0
    %353 = vmatprep.subr.mxu0 0.0
    %354 = vmatpush2.msra.mxu0 0.0
    %355 = vmatprep.subr.mxu0 0.0
    %356 = vmatpush2.msra.mxu0 0.0
    %357 = vmatprep.subr.mxu0 0.0
    %358 = vmatpush2.msra.mxu0 0.0
    %359 = vmatprep.subr.mxu0 0.0
    %360 = vmatpush2.msra.mxu0 0.0
    %361 = vmatprep.subr.mxu0 0.0
    %362 = vmatpush2.msra.mxu0 0.0
    %363 = vmatprep.subr.mxu0 0.0
    %364 = vmatpush2.msra.mxu0 0.0
    %365 = vmatprep.subr.mxu0 0.0
    %366 = vmatpush2.msra.mxu0 0.0
    %367 = vmatprep.subr.mxu0 0.0
    %368 = vmatpush2.msra.mxu0 0.0
    %369 = vmatprep.subr.mxu0 0.0
    %370 = vmatpush2.msra.mxu0 0.0
    %371 = vmatprep.subr.mxu0 0.0
    %372 = vmatpush2.msra.mxu0 0.0
    %373 = vmatprep.subr.mxu0 0.0
    %374 = vmatpush2.msra.mxu0 0.0
    %375 = vmatprep.subr.mxu0 0.0
    %376 = vmatpush2.msra.mxu0 0.0
    %377 = vmatprep.subr.mxu0 0.0
    %378 = vmatpush2.msra.mxu0 0.0
    %379 = vmatprep.subr.mxu0 0.0
    %380 = vmatpush2.msra.mxu0 0.0
    %381 = vmatprep.subr.mxu0 0.0
    %382 = vmatpush2.msra.mxu0 0.0
    %383 = vmatprep.mubr.f32.mxu0 0.0
    %384 = vmatmul.mubr.f32.gmra.mxu0 %v283
    %v385 = vpop.f32.mrf.mxu0
    %v386 = vadd.f32 %v318, %v385
    %v387 = vpop.f32.mrf.mxu0
    %388 = vmatprep.mubr.f32.mxu0 0.0
    %389 = vmatmul.mubr.f32.gmra.mxu0 %v284
    %v390 = vpop.f32.mrf.mxu0
    %v391 = vadd.f32 %v318, %v390
    %v392 = vpop.f32.mrf.mxu0
    %393 = vmatprep.mubr.f32.mxu0 0.0
    %394 = vmatmul.mubr.f32.gmra.mxu0 %v285
    %v395 = vpop.f32.mrf.mxu0
    %v396 = vadd.f32 %v318, %v395
    %v397 = vpop.f32.mrf.mxu0
    %398 = vmatprep.mubr.f32.mxu0 0.0
    %399 = vmatmul.mubr.f32.gmra.mxu0 %v286
    %v400 = vpop.f32.mrf.mxu0
    %v401 = vadd.f32 %v318, %v400
    %v402 = vpop.f32.mrf.mxu0
    %403 = vmatprep.mubr.f32.mxu0 0.0
    %404 = vmatmul.mubr.f32.gmra.mxu0 %v287
    %v405 = vpop.f32.mrf.mxu0
    %v406 = vadd.f32 %v318, %v405
    %v407 = vpop.f32.mrf.mxu0
    %408 = vmatprep.mubr.f32.mxu0 0.0
    %409 = vmatmul.mubr.f32.gmra.mxu0 %v288
    %v410 = vpop.f32.mrf.mxu0
    %v411 = vadd.f32 %v318, %v410
    %v412 = vpop.f32.mrf.mxu0
    %413 = vmatprep.mubr.f32.mxu0 0.0
    %414 = vmatmul.mubr.f32.gmra.mxu0 %v289
    %v415 = vpop.f32.mrf.mxu0
    %v416 = vadd.f32 %v318, %v415
    %v417 = vpop.f32.mrf.mxu0
    %418 = vmatprep.mubr.f32.mxu0 0.0
    %419 = vmatmul.mubr.f32.gmra.mxu0 %v290
    %v420 = vpop.f32.mrf.mxu0
    %v421 = vadd.f32 %v318, %v420
    %v422 = vpop.f32.mrf.mxu0
    %423 = vmatprep.mubr.f32.mxu0 0.0
    %424 = vmatmul.mubr.f32.gmra.mxu0 %v291
    %v425 = vpop.f32.mrf.mxu0
    %v426 = vadd.f32 %v318, %v425
    %v427 = vpop.f32.mrf.mxu0
    %428 = vmatprep.mubr.f32.mxu0 0.0
    %429 = vmatmul.mubr.f32.gmra.mxu0 %v292
    %v430 = vpop.f32.mrf.mxu0
    %v431 = vadd.f32 %v318, %v430
    %v432 = vpop.f32.mrf.mxu0
    %433 = vmatprep.mubr.f32.mxu0 0.0
    %434 = vmatmul.mubr.f32.gmra.mxu0 %v293
    %v435 = vpop.f32.mrf.mxu0
    %v436 = vadd.f32 %v318, %v435
    %v437 = vpop.f32.mrf.mxu0
    %438 = vmatprep.mubr.f32.mxu0 0.0
    %439 = vmatmul.mubr.f32.gmra.mxu0 %v294
    %v440 = vpop.f32.mrf.mxu0
    %v441 = vadd.f32 %v318, %v440
    %v442 = vpop.f32.mrf.mxu0
    %443 = vmatprep.mubr.f32.mxu0 0.0
    %444 = vmatmul.mubr.f32.gmra.mxu0 %v295
    %v445 = vpop.f32.mrf.mxu0
    %v446 = vadd.f32 %v318, %v445
    %v447 = vpop.f32.mrf.mxu0
    %448 = vmatprep.mubr.f32.mxu0 0.0
    %449 = vmatmul.mubr.f32.gmra.mxu0 %v296
    %v450 = vpop.f32.mrf.mxu0
    %v451 = vadd.f32 %v318, %v450
    %v452 = vpop.f32.mrf.mxu0
    %453 = vmatprep.mubr.f32.mxu0 0.0
    %454 = vmatmul.mubr.f32.gmra.mxu0 %v297
    %v455 = vpop.f32.mrf.mxu0
    %v456 = vadd.f32 %v318, %v455
    %v457 = vpop.f32.mrf.mxu0
    %458 = vmatprep.mubr.f32.mxu0 0.0
    %459 = vmatmul.mubr.f32.gmra.mxu0 %v298
    %v460 = vpop.f32.mrf.mxu0
    %v461 = vadd.f32 %v318, %v460
    %v462 = vpop.f32.mrf.mxu0
    %463 = vdwg.mxu0
    %v464 = vmax.f32 %v386, 0.0
    %v465 = vmax.f32 %v391, 0.0
    %v466 = vmax.f32 %v396, 0.0
    %v467 = vmax.f32 %v401, 0.0
    %v468 = vmax.f32 %v406, 0.0
    %v469 = vmax.f32 %v411, 0.0
    %v470 = vmax.f32 %v416, 0.0
    %v471 = vmax.f32 %v421, 0.0
    %v472 = vmax.f32 %v426, 0.0
    %v473 = vmax.f32 %v431, 0.0
    %v474 = vmax.f32 %v436, 0.0
    %v475 = vmax.f32 %v441, 0.0
    %v476 = vmax.f32 %v446, 0.0
    %v477 = vmax.f32 %v451, 0.0
    %v478 = vmax.f32 %v456, 0.0
    %v479 = vmax.f32 %v461, 0.0
    %v480 = vld [vmem:[#allocation4] sm:$0xff]
    %481 = vmatprep.subr.mxu0 0.0
    %482 = vmatpush1.xpose.msra.mxu0 %v479
    %483 = vmatprep.subr.mxu0 0.0
    %484 = vmatpush1.xpose.msra.mxu0 %v478
    %485 = vmatprep.subr.mxu0 0.0
    %486 = vmatpush1.xpose.msra.mxu0 %v477
    %487 = vmatprep.subr.mxu0 0.0
    %488 = vmatpush1.xpose.msra.mxu0 %v476
    %489 = vmatprep.subr.mxu0 0.0
    %490 = vmatpush1.xpose.msra.mxu0 %v475
    %491 = vmatprep.subr.mxu0 0.0
    %492 = vmatpush1.xpose.msra.mxu0 %v474
    %493 = vmatprep.subr.mxu0 0.0
    %494 = vmatpush1.xpose.msra.mxu0 %v473
    %495 = vmatprep.subr.mxu0 0.0
    %496 = vmatpush1.xpose.msra.mxu0 %v472
    %497 = vmatprep.subr.mxu0 0.0
    %498 = vmatpush1.xpose.msra.mxu0 %v471
    %499 = vmatprep.subr.mxu0 0.0
    %500 = vmatpush1.xpose.msra.mxu0 %v470
    %501 = vmatprep.subr.mxu0 0.0
    %502 = vmatpush1.xpose.msra.mxu0 %v469
    %503 = vmatprep.subr.mxu0 0.0
    %504 = vmatpush1.xpose.msra.mxu0 %v468
    %505 = vmatprep.subr.mxu0 0.0
    %506 = vmatpush1.xpose.msra.mxu0 %v467
    %507 = vmatprep.subr.mxu0 0.0
    %508 = vmatpush1.xpose.msra.mxu0 %v466
    %509 = vmatprep.subr.mxu0 0.0
    %510 = vmatpush1.xpose.msra.mxu0 %v465
    %511 = vmatprep.subr.mxu0 0.0
    %512 = vmatpush1.xpose.msra.mxu0 %v464
    %513 = vmatprep.subr.mxu0 0.0
    %514 = vmatpush2.xpose.msra.mxu0 0.0
    %515 = vmatprep.subr.mxu0 0.0
    %516 = vmatpush2.xpose.msra.mxu0 0.0
    %517 = vmatprep.subr.mxu0 0.0
    %518 = vmatpush2.xpose.msra.mxu0 0.0
    %519 = vmatprep.subr.mxu0 0.0
    %520 = vmatpush2.xpose.msra.mxu0 0.0
    %521 = vmatprep.subr.mxu0 0.0
    %522 = vmatpush2.xpose.msra.mxu0 0.0
    %523 = vmatprep.subr.mxu0 0.0
    %524 = vmatpush2.xpose.msra.mxu0 0.0
    %525 = vmatprep.subr.mxu0 0.0
    %526 = vmatpush2.xpose.msra.mxu0 0.0
    %527 = vmatprep.subr.mxu0 0.0
    %528 = vmatpush2.xpose.msra.mxu0 0.0
    %529 = vmatprep.subr.mxu0 0.0
    %530 = vmatpush2.xpose.msra.mxu0 0.0
    %531 = vmatprep.subr.mxu0 0.0
    %532 = vmatpush2.xpose.msra.mxu0 0.0
    %533 = vmatprep.subr.mxu0 0.0
    %534 = vmatpush2.xpose.msra.mxu0 0.0
    %535 = vmatprep.subr.mxu0 0.0
    %536 = vmatpush2.xpose.msra.mxu0 0.0
    %537 = vmatprep.subr.mxu0 0.0
    %538 = vmatpush2.xpose.msra.mxu0 0.0
    %539 = vmatprep.subr.mxu0 0.0
    %540 = vmatpush2.xpose.msra.mxu0 0.0
    %541 = vmatprep.subr.mxu0 0.0
    %542 = vmatpush2.xpose.msra.mxu0 0.0
    %543 = vmatprep.subr.mxu0 0.0
    %544 = vmatpush2.xpose.msra.mxu0 0.0
    %545 = vmatprep.mubr.f32.mxu0 0.0
    %546 = vmatmul.mubr.f32.gmra.mxu0 %v480
    %v547 = vpop.f32.mrf.mxu0
    %v548 = vadd.f32 0.0, %v547
    %v549 = vpop.f32.mrf.mxu0
    %550 = vdwg.mxu0
    %552 = vset.pattern.permute.xlu0 0
    %553 = vperm.xlu0 %552, %v44
    %v554 = vpop.permute.xlu0 %553
    %v556 = vadd.f32 %v548, %v554
    %557 = vst [vmem:[%s3] sm:$0x1] %v556
    // Predicated region
    $region22: #{d_forward.1} parent=1 // pred_check
      _
    $region23: #{d_forward.1} parent=1 // pred_check_branch
      %559 = sbr.rel (0) target = $region25
    $region24: #{d_forward.1} parent=1 // pred_region
      _
    $region25: #{d_forward.1} parent=1 // pred_fallthru
      _
    // Predicated region
    $region26: #{d_forward.1} parent=1 // pred_check
      _
    $region27: #{d_forward.1} parent=1 // pred_check_branch
      %561 = sbr.rel (0) target = $region29
    $region28: #{d_forward.1} parent=1 // pred_region
      _
    $region29: #{d_forward.1} parent=1 // pred_fallthru
      _
    %562 = vsyncpa [#allocation3], 1
    %563 = vsyncpa [#allocation5], 1

</llo_original>
